<compile_context>
chip_gen: v5e
topology: v5e:2x2
jax: 0.10.0
libtpu: 0.0.40
codegen_flags: <defaults>
</compile_context>

<pallas_src>
import jax
import jax.numpy as jnp
from jax.experimental import pallas as pl
from jax.experimental.pallas import tpu as pltpu


def _round_up(x, m):
    return ((x + m - 1) // m) * m


def _cdiv(a, b):
    return (a + b - 1) // b


def _vmem_capacity_bytes():
    """Per-core VMEM capacity; conservative fallback if the query fails."""
    try:
        return int(pltpu.get_tpu_info().vmem_capacity_bytes)
    except Exception:
        return 64 * 1024 * 1024  # v7x per-TensorCore VMEM (smallest of the fleet)


def _balanced_row_tile(M, tm_target):
    """Row tile <= tm_target with balanced (low-padding) tiles, sublane-aligned."""
    tm_target = max(8, int(tm_target))
    n_tiles = max(1, _cdiv(M, tm_target))
    return min(_round_up(_cdiv(M, n_tiles), 8), _round_up(M, 8))


# --------------------------------------------------------------------------- #
# Kernels
# --------------------------------------------------------------------------- #
def _ffn_resident_kernel(x_ref, w1_ref, b1_ref, w2_ref, b2_ref, o_ref):
    """Weights fully VMEM-resident: straight-through compute, no accumulator."""
    # x_ref: (tm, d_model); w1_ref: (d_model, d_ff); b1_ref: (1, d_ff)
    # w2_ref: (d_ff, d_model); b2_ref: (1, d_model); o_ref: (tm, d_model)
    h = jnp.dot(x_ref[...], w1_ref[...], preferred_element_type=jnp.float32)
    h = jnp.maximum(h + b1_ref[...].astype(jnp.float32), 0.0)
    y = jnp.dot(h.astype(w2_ref.dtype), w2_ref[...],
                preferred_element_type=jnp.float32)
    o_ref[...] = (y + b2_ref[...].astype(jnp.float32)).astype(o_ref.dtype)


def _ffn_streamed_kernel(x_ref, w1_ref, b1_ref, w2_ref, b2_ref, o_ref, acc_ref):
    """d_ff streamed on grid axis 1; f32 accumulator over the d_ff slices."""
    # x_ref: (tm, d_model)
    # w1_ref: (1, d_model, tf); b1_ref: (1, 1, tf); w2_ref: (1, tf, d_model)
    # b2_ref: (1, d_model) fully VMEM-resident; acc_ref: (tm, d_model) f32
    f = pl.program_id(1)

    @pl.when(f == 0)
    def _():
        acc_ref[...] = jnp.zeros_like(acc_ref)

    # First matmul + bias + ReLU on the d_ff slice (ReLU is elementwise over
    # d_ff, so tiling d_ff keeps the fusion exact).
    h = jnp.dot(x_ref[...], w1_ref[0], preferred_element_type=jnp.float32)
    h = jnp.maximum(h + b1_ref[0].astype(jnp.float32), 0.0)

    # Second matmul: accumulate-over-K (K = d_ff slices) into the f32 scratch.
    acc_ref[...] += jnp.dot(h.astype(w2_ref.dtype), w2_ref[0],
                            preferred_element_type=jnp.float32)

    @pl.when(f == pl.num_programs(1) - 1)
    def _():
        o_ref[...] = (acc_ref[...] + b2_ref[...].astype(jnp.float32)
                      ).astype(o_ref.dtype)


# --------------------------------------------------------------------------- #
# Wrapper
# --------------------------------------------------------------------------- #
def positionwise_ffn(x, w1, b1, w2, b2, *, tm=None, tf=None, force_streamed=False):
    """x: (batch, seq, d_model) -> (batch, seq, d_model).

    tm / tf are optional tile overrides; by default tiles are chosen from the
    chip's actual VMEM capacity.  Pass bf16 x / weights for the fast MXU path;
    accumulation is always f32.
    """
    batch, seq, d_model = x.shape
    d_ff = w1.shape[1]
    assert w1.shape == (d_model, d_ff)
    assert b1.shape == (d_ff,)
    assert w2.shape == (d_ff, d_model)
    assert b2.shape == (d_model,)
    M = batch * seq

    x_b = jnp.dtype(x.dtype).itemsize
    w_b = jnp.dtype(w1.dtype).itemsize

    vmem_cap = _vmem_capacity_bytes()
    budget = int(vmem_cap * 0.85)           # headroom for Mosaic internals

    weight_bytes = (w1.size + b1.size + w2.size + b2.size) * w_b

    x2 = x.reshape(M, d_model)
    b1_2 = b1.reshape(1, d_ff)
    b2_2 = b2.reshape(1, d_model)

    # ---------------------------------------------------------------- path
    tm_eff = None
    vmem_est = 0
    use_resident = (not force_streamed) and weight_bytes <= int(budget * 0.75)
    if use_resident:
        cands = (tm,) if tm is not None else (1024, 512, 256, 128)
        act_budget = budget - weight_bytes
        for t in cands:
            cand = _balanced_row_tile(M, t)
            act = (4 * cand * d_model * x_b      # x + out tiles, double-buffered
                   + cand * d_ff * 4             # h intermediate (f32)
                   + cand * d_model * 4)         # second-matmul result (f32)
            if act <= act_budget:
                tm_eff = cand
                vmem_est = weight_bytes + act
                break
        else:
            use_resident = False

    if use_resident:
        # -------- resident-weights path: W1/W2/b1/b2 DMA'd exactly once ------
        M_pad = _round_up(M, tm_eff)
        if M_pad != M:
            x2 = jnp.pad(x2, ((0, M_pad - M), (0, 0)))
        n_row_tiles = M_pad // tm_eff

        grid_spec = pltpu.PrefetchScalarGridSpec(
            num_scalar_prefetch=0,
            grid=(n_row_tiles,),
            in_specs=[
                pl.BlockSpec((tm_eff, d_model), lambda i: (i, 0)),      # x rows
                pl.BlockSpec(memory_space=pltpu.MemorySpace.VMEM),      # W1 resident
                pl.BlockSpec(memory_space=pltpu.MemorySpace.VMEM),      # b1 resident
                pl.BlockSpec(memory_space=pltpu.MemorySpace.VMEM),      # W2 resident
                pl.BlockSpec(memory_space=pltpu.MemorySpace.VMEM),      # b2 resident
            ],
            out_specs=pl.BlockSpec((tm_eff, d_model), lambda i: (i, 0)),
        )
        kernel = _ffn_resident_kernel
        operands = (x2, w1, b1_2, w2, b2_2)
        dim_sem = ("parallel",)
        weight_traffic = weight_bytes                        # weights read once
    else:
        # -------- streamed-d_ff path -----------------------------------------
        # tm is the primary lever (weight HBM traffic ~ 1/tm) -> search tm
        # from large to small, then the largest tf that still fits.
        tf_cands = [t for t in (2048, 1024, 512, 256, 128) if t <= d_ff] or [128]
        if tf is not None:
            tf_cands = [int(tf)]
        tm_cands = (tm,) if tm is not None else (2048, 1024, 512, 256, 128, 64, 32, 16, 8)

        tf_eff = None
        for t in tm_cands:
            cand = _balanced_row_tile(M, t)
            for tfc in tf_cands:
                need = (4 * cand * d_model * x_b            # x + out, dbl-buffered
                        + 2 * (d_model + 1) * tfc * w_b     # W1 + b1 slices, dbl-buffered
                        + 2 * tfc * d_model * w_b           # W2 slices, dbl-buffered
                        + d_model * w_b                     # b2 (VMEM resident)
                        + cand * d_model * 4                # f32 accumulator scratch
                        + cand * tfc * 4)                   # f32 intermediate h
                if need <= budget:
                    tm_eff, tf_eff, vmem_est = cand, tfc, need
                    break
            if tf_eff is not None:
                break
        if tf_eff is None:                                   # last-resort tiny tiles
            tm_eff, tf_eff, vmem_est = _balanced_row_tile(M, 8), tf_cands[-1], budget

        M_pad = _round_up(M, tm_eff)
        if M_pad != M:
            x2 = jnp.pad(x2, ((0, M_pad - M), (0, 0)))
        n_row_tiles = M_pad // tm_eff

        F_pad = _round_up(d_ff, tf_eff)
        nF = F_pad // tf_eff
        # Zero padding of d_ff is exact: b1 padded with zeros alongside W1
        # (relu(0 + 0) = 0) and zero rows of W2 contribute nothing.
        w1p = jnp.pad(w1, ((0, 0), (0, F_pad - d_ff))) if F_pad != d_ff else w1
        w2p = jnp.pad(w2, ((0, F_pad - d_ff), (0, 0))) if F_pad != d_ff else w2
        b1p = jnp.pad(b1, (0, F_pad - d_ff)) if F_pad != d_ff else b1
        # Pre-reshape so every per-step weight DMA is fully contiguous in HBM.
        w1_3d = w1p.reshape(d_model, nF, tf_eff).transpose(1, 0, 2)  # (nF, d_model, tf)
        w2_3d = w2p.reshape(nF, tf_eff, d_model)                     # (nF, tf, d_model)
        b1_3d = b1p.reshape(nF, 1, tf_eff)                           # (nF, 1, tf)

        grid_spec = pltpu.PrefetchScalarGridSpec(
            num_scalar_prefetch=0,
            grid=(n_row_tiles, nF),
            in_specs=[
                pl.BlockSpec((tm_eff, d_model), lambda i, f: (i, 0)),        # x rows
                pl.BlockSpec((1, d_model, tf_eff), lambda i, f: (f, 0, 0)),  # W1 slice
                pl.BlockSpec((1, 1, tf_eff), lambda i, f: (f, 0, 0)),        # b1 slice
                pl.BlockSpec((1, tf_eff, d_model), lambda i, f: (f, 0, 0)),  # W2 slice
                pl.BlockSpec(memory_space=pltpu.MemorySpace.VMEM),           # b2 resident
            ],
            out_specs=pl.BlockSpec((tm_eff, d_model), lambda i, f: (i, 0)),
            scratch_shapes=[pltpu.VMEM((tm_eff, d_model), jnp.float32)],
        )
        kernel = _ffn_streamed_kernel
        operands = (x2, w1_3d, b1_3d, w2_3d, b2_2)
        dim_sem = ("parallel", "arbitrary")
        weight_traffic = (n_row_tiles * (w1.size + b1.size + w2.size) * w_b
                          + b2.size * w_b)

    # ---- VMEM limit clamped to the chip's real capacity (v7x: 64 MiB) -------
    vmem_limit = int(min(vmem_cap - (2 << 20),
                         max(int(1.3 * vmem_est) + (4 << 20), 32 << 20)))

    # Advisory cost estimate, kept in sync with the chosen weight-traffic mode.
    cost = pl.CostEstimate(
        flops=4 * M * d_model * d_ff,
        transcendentals=0,
        bytes_accessed=int(2 * M * d_model * x_b + weight_traffic),
    )

    out2 = pl.pallas_call(
        kernel,
        out_shape=jax.ShapeDtypeStruct((M_pad, d_model), x.dtype),
        grid_spec=grid_spec,
        compiler_params=pltpu.CompilerParams(
            dimension_semantics=dim_sem,
            vmem_limit_bytes=vmem_limit,
        ),
        cost_estimate=cost,
    )(*operands)

    if M_pad != M:
        out2 = out2[:M]
    return out2.reshape(batch, seq, d_model)


def init_params(key, d_model, d_ff, dtype=jnp.float32):
    """Deterministic init mimicking nn.Linear's uniform(-1/sqrt(fan_in), ...)."""
    k1, k2, k3, k4 = jax.random.split(key, 4)
    lim1 = 1.0 / (d_model ** 0.5)
    lim2 = 1.0 / (d_ff ** 0.5)
    # stored already transposed vs. nn.Linear: (in, out)
    w1 = jax.random.uniform(k1, (d_model, d_ff), dtype, -lim1, lim1)
    b1 = jax.random.uniform(k2, (d_ff,), dtype, -lim1, lim1)
    w2 = jax.random.uniform(k3, (d_ff, d_model), dtype, -lim2, lim2)
    b2 = jax.random.uniform(k4, (d_model,), dtype, -lim2, lim2)
    return w1, b1, w2, b2


if __name__ == "__main__":
    batch, seq, d_model, d_ff = 2, 8, 32, 64

    key = jax.random.PRNGKey(0)
    kx, kp = jax.random.split(key)
    x = jax.random.normal(kx, (batch, seq, d_model), jnp.float32)
    w1, b1, w2, b2 = init_params(kp, d_model, d_ff)

    # Pure-JAX reference (eval-mode dropout = identity).
    ref = jnp.maximum(x @ w1 + b1, 0.0) @ w2 + b2

    # 1) Resident-weights path (weights fit VMEM at these shapes), f32 — exact.
    out = jax.block_until_ready(positionwise_ffn(x, w1, b1, w2, b2))
    assert out.shape == (batch, seq, d_model)
    assert jnp.allclose(out, ref, atol=1e-5, rtol=1e-5)

    # 2) Streamed-d_ff path (forced): 2 d_ff slices + 2 row tiles, exercising
    #    the f32 accumulator init/accumulate/finalize logic.
    out_s = jax.block_until_ready(
        positionwise_ffn(x, w1, b1, w2, b2, force_streamed=True, tm=8, tf=32))
    assert jnp.allclose(out_s, ref, atol=1e-5, rtol=1e-5)

    # 3) bf16 inputs/weights (fast MXU path), f32 accumulation inside the kernel.
    #    Note: the inter-matmul activation h is cast to bf16 before the second
    #    matmul, so the looser tolerance below is expected.
    xb = x.astype(jnp.bfloat16)
    w1b, b1b, w2b, b2b = (t.astype(jnp.bfloat16) for t in (w1, b1, w2, b2))
    outb = jax.block_until_ready(positionwise_ffn(xb, w1b, b1b, w2b, b2b))
    assert jnp.allclose(outb.astype(jnp.float32), ref, atol=1e-1, rtol=1e-1)

    print("KERNEL_OK")
</pallas_src>

<mosaic_0001>
module attributes {stable_mosaic.version = 11 : i64} {
  func.func @_ffn_resident_kernel(%arg0: i32, %arg1: memref<16x32xf32, #tpu.memory_space<vmem>>, %arg2: memref<32x64xf32, #tpu.memory_space<vmem>>, %arg3: memref<1x64xf32, #tpu.memory_space<vmem>>, %arg4: memref<64x32xf32, #tpu.memory_space<vmem>>, %arg5: memref<1x32xf32, #tpu.memory_space<vmem>>, %arg6: memref<16x32xf32, #tpu.memory_space<vmem>>) attributes {dimension_semantics = [#tpu.dimension_semantics<parallel>], iteration_bounds = array<i64: 1>, scalar_prefetch = 0 : i64, scratch_operands = 0 : i64, tpu.core_type = #tpu.core_type<tc>, window_params = [{transform_indices = @transform_0, window_bounds = array<i64: 16, 32>}, {pipeline_mode = #tpu.pipeline_mode<synchronous>, transform_indices = @transform_1, window_bounds = array<i64: 32, 64>}, {pipeline_mode = #tpu.pipeline_mode<synchronous>, transform_indices = @transform_2, window_bounds = array<i64: 1, 64>}, {pipeline_mode = #tpu.pipeline_mode<synchronous>, transform_indices = @transform_3, window_bounds = array<i64: 64, 32>}, {pipeline_mode = #tpu.pipeline_mode<synchronous>, transform_indices = @transform_4, window_bounds = array<i64: 1, 32>}, {transform_indices = @transform_5, window_bounds = array<i64: 16, 32>}]} {
    %c0 = arith.constant 0 : index
    %c0_0 = arith.constant 0 : index
    %0 = vector.load %arg1[%c0, %c0_0] : memref<16x32xf32, #tpu.memory_space<vmem>>, vector<16x32xf32>
    %c0_1 = arith.constant 0 : index
    %c0_2 = arith.constant 0 : index
    %1 = vector.load %arg2[%c0_1, %c0_2] : memref<32x64xf32, #tpu.memory_space<vmem>>, vector<32x64xf32>
    %cst = arith.constant dense<0.000000e+00> : vector<16x64xf32>
    %2 = tpu.matmul %0, %1, %cst {dimension_numbers = #tpu.dot_dimension_numbers<[1], [0], [0], [1], [0, 0, 1, 1], [], []>} : vector<16x32xf32>, vector<32x64xf32>, vector<16x64xf32> -> vector<16x64xf32>
    %c0_3 = arith.constant 0 : index
    %c0_4 = arith.constant 0 : index
    %3 = vector.load %arg3[%c0_3, %c0_4] : memref<1x64xf32, #tpu.memory_space<vmem>>, vector<1x64xf32>
    %4 = vector.broadcast %3 : vector<1x64xf32> to vector<16x64xf32>
    %5 = arith.addf %2, %4 : vector<16x64xf32>
    %cst_5 = arith.constant 0.000000e+00 : f32
    %6 = vector.broadcast %cst_5 : f32 to vector<16x64xf32>
    %7 = arith.maximumf %5, %6 : vector<16x64xf32>
    %c0_6 = arith.constant 0 : index
    %c0_7 = arith.constant 0 : index
    %8 = vector.load %arg4[%c0_6, %c0_7] : memref<64x32xf32, #tpu.memory_space<vmem>>, vector<64x32xf32>
    %cst_8 = arith.constant dense<0.000000e+00> : vector<16x32xf32>
    %9 = tpu.matmul %7, %8, %cst_8 {dimension_numbers = #tpu.dot_dimension_numbers<[1], [0], [0], [1], [0, 0, 1, 1], [], []>} : vector<16x64xf32>, vector<64x32xf32>, vector<16x32xf32> -> vector<16x32xf32>
    %c0_9 = arith.constant 0 : index
    %c0_10 = arith.constant 0 : index
    %10 = vector.load %arg5[%c0_9, %c0_10] : memref<1x32xf32, #tpu.memory_space<vmem>>, vector<1x32xf32>
    %11 = vector.broadcast %10 : vector<1x32xf32> to vector<16x32xf32>
    %12 = arith.addf %9, %11 : vector<16x32xf32>
    %c0_11 = arith.constant 0 : index
    %c0_12 = arith.constant 0 : index
    %13 = vector.load %arg6[%c0_11, %c0_12] : memref<16x32xf32, #tpu.memory_space<vmem>>, vector<16x32xf32>
    tpu.vector_store %arg6[%c0_11, %c0_12], %12 {strides = array<i32>} : memref<16x32xf32, #tpu.memory_space<vmem>>, vector<16x32xf32>,
    return
  }
  func.func @transform_0(%arg0: i32) -> (i32, i32) {
    %c0_i32 = arith.constant 0 : i32
    %c0_i32_0 = arith.constant 0 : i32
    return %arg0, %c0_i32 : i32, i32
  }
  func.func @transform_1(%arg0: i32) -> (i32, i32) {
    %c0_i32 = arith.constant 0 : i32
    %c0_i32_0 = arith.constant 0 : i32
    %c0_i32_1 = arith.constant 0 : i32
    return %c0_i32, %c0_i32_0 : i32, i32
  }
  func.func @transform_2(%arg0: i32) -> (i32, i32) {
    %c0_i32 = arith.constant 0 : i32
    %c0_i32_0 = arith.constant 0 : i32
    %c0_i32_1 = arith.constant 0 : i32
    return %c0_i32, %c0_i32_0 : i32, i32
  }
  func.func @transform_3(%arg0: i32) -> (i32, i32) {
    %c0_i32 = arith.constant 0 : i32
    %c0_i32_0 = arith.constant 0 : i32
    %c0_i32_1 = arith.constant 0 : i32
    return %c0_i32, %c0_i32_0 : i32, i32
  }
  func.func @transform_4(%arg0: i32) -> (i32, i32) {
    %c0_i32 = arith.constant 0 : i32
    %c0_i32_0 = arith.constant 0 : i32
    %c0_i32_1 = arith.constant 0 : i32
    return %c0_i32, %c0_i32_0 : i32, i32
  }
  func.func @transform_5(%arg0: i32) -> (i32, i32) {
    %c0_i32 = arith.constant 0 : i32
    %c0_i32_0 = arith.constant 0 : i32
    return %arg0, %c0_i32 : i32, i32
  }
}

</mosaic_0001>

<llo_original>
// kernel: tpu_custom_call.1
$region0: #{tpu_custom_call.1}
  #allocation0 [shape = 'u32[]', space=smem, size = 0x4, offset = 0x4, fixed_abs, tag = 'smem constant byte address 0x4 - core index']
  #allocation1 [shape = 'u32[72,128]{1,0:T(1,128)}', space=vmem, size = 0x9000, scoped, tag = 'internal scratch']
  %s0 = inlined_call_operand.vmem [shape: f32[16,32], index: 0, kind: input, shape index: {}]
  %s1 = inlined_call_operand.vmem [shape: f32[32,64], index: 1, kind: input, shape index: {}]
  %s2 = inlined_call_operand.vmem [shape: f32[1,64], index: 2, kind: input, shape index: {}]
  %s3 = inlined_call_operand.vmem [shape: f32[64,32], index: 3, kind: input, shape index: {}]
  %s4 = inlined_call_operand.vmem [shape: f32[1,32], index: 4, kind: input, shape index: {}]
  %s5 = inlined_call_operand.hbm [shape: f32[16,32], index: 5, kind: output, shape index: {}]
  %s6 = sld [smem:[#allocation0]]
  $region30: #{tpu_custom_call.1} parent=0
    _
  %s8 = ssub.s32 1, %s6
  %s9 = scalar_select 0, %s8, %s6
  $region1: #{tpu_custom_call.1} parent=0
    #allocation2 [shape = 'u8[8192]{0}', space=vmem, size = 0x2000, scoped, tag = 'output window, operand 0, single buffered']
    #allocation3 [shape = 's32[1]{0}', space=sflag, size = 0x4, scoped, tag = 'scoped memory for tpu_custom_call.1']
    %10 = vsyncpa [#allocation3], 0
    // Predicated region
    $region2: #{tpu_custom_call.1} parent=1 // pred_check
      _
    $region3: #{tpu_custom_call.1} parent=1 // pred_check_branch
      %12 = sbr.rel (0) target = $region5
    $region4: #{tpu_custom_call.1} parent=1 // pred_region
      _
    $region5: #{tpu_custom_call.1} parent=1 // pred_fallthru
      _
    // Predicated region
    $region6: #{tpu_custom_call.1} parent=1 // pred_check
      _
    $region7: #{tpu_custom_call.1} parent=1 // pred_check_branch
      %14 = sbr.rel (0) target = $region9
    $region8: #{tpu_custom_call.1} parent=1 // pred_region
      _
    $region9: #{tpu_custom_call.1} parent=1 // pred_fallthru
      _
    // Predicated region
    $region10: #{tpu_custom_call.1} parent=1 // pred_check
      _
    $region11: #{tpu_custom_call.1} parent=1 // pred_check_branch
      %16 = sbr.rel (0) target = $region13
    $region12: #{tpu_custom_call.1} parent=1 // pred_region
      _
    $region13: #{tpu_custom_call.1} parent=1 // pred_fallthru
      _
    // Predicated region
    $region14: #{tpu_custom_call.1} parent=1 // pred_check
      _
    $region15: #{tpu_custom_call.1} parent=1 // pred_check_branch
      %18 = sbr.rel (0) target = $region17
    $region16: #{tpu_custom_call.1} parent=1 // pred_region
      _
    $region17: #{tpu_custom_call.1} parent=1 // pred_fallthru
      _
    // Predicated region
    $region18: #{tpu_custom_call.1} parent=1 // pred_check
      _
    $region19: #{tpu_custom_call.1} parent=1 // pred_check_branch
      %20 = sbr.rel (0) target = $region21
    $region20: #{tpu_custom_call.1} parent=1 // pred_region
      _
    $region21: #{tpu_custom_call.1} parent=1 // pred_fallthru
      _
    %v21 = vld [vmem:[%s0] sm:$0xff]
    %v22 = vld [vmem:[%s0 + $0x8] sm:$0xff]
    %v23 = vld [vmem:[%s1] sm:$0xff]
    %v24 = vld [vmem:[%s1 + $0x8] sm:$0xff]
    %v25 = vld [vmem:[%s1 + $0x10] sm:$0xff]
    %v26 = vld [vmem:[%s1 + $0x18] sm:$0xff]
    %v27 = vld [vmem:[%s2] sm:$0x1]
    %v29 = vperm.slane %v27, 0
    %vm31 = vcmask 261120
    %v33 = vsel %vm31, %v21, 0
    %v36 = vsel %vm31, %v22, 0
    %38 = vmatpush.msra.mxu0 0.0
    %39 = vmatpush.msra.mxu0 0.0
    %40 = vmatpush.msra.mxu0 0.0
    %41 = vmatpush.msra.mxu0 0.0
    %42 = vmatpush.msra.mxu0 0.0
    %43 = vmatpush.msra.mxu0 0.0
    %44 = vmatpush.msra.mxu0 0.0
    %45 = vmatpush.msra.mxu0 0.0
    %46 = vmatpush.msra.mxu0 0.0
    %47 = vmatpush.msra.mxu0 0.0
    %48 = vmatpush.msra.mxu0 0.0
    %49 = vmatpush.msra.mxu0 0.0
    %50 = vmatpush.msra.mxu0 %v26
    %51 = vmatpush.msra.mxu0 %v25
    %52 = vmatpush.msra.mxu0 %v24
    %53 = vmatpush.msra.mxu0 %v23
    %54 = vmatmul.f32.gmra.mxu0 %v33
    %v55 = vpop.f32.mrf.mxu0
    %v56 = vadd.f32 %v29, %v55
    %57 = vmatmul.f32.gmra.mxu0 %v36
    %v58 = vpop.f32.mrf.mxu0
    %v59 = vadd.f32 %v29, %v58
    %60 = vdwg.mxu0
    %v61 = vmax.f32 %v56, 0.0
    %v62 = vmax.f32 %v59, 0.0
    %v63 = vld [vmem:[%s3] sm:$0xff]
    %v64 = vld [vmem:[%s3 + $0x8] sm:$0xff]
    %v65 = vld [vmem:[%s3 + $0x10] sm:$0xff]
    %v66 = vld [vmem:[%s3 + $0x18] sm:$0xff]
    %v67 = vld [vmem:[%s3 + $0x20] sm:$0xff]
    %v68 = vld [vmem:[%s3 + $0x28] sm:$0xff]
    %v69 = vld [vmem:[%s3 + $0x30] sm:$0xff]
    %v70 = vld [vmem:[%s3 + $0x38] sm:$0xff]
    %v71 = vld [vmem:[%s4] sm:$0x1]
    %v73 = vperm.slane %v71, 0
    %vm75 = vcmask 523264
    %v77 = vsel %vm75, %v61, 0
    %v80 = vsel %vm75, %v62, 0
    %82 = vmatpush.msra.mxu0 0.0
    %83 = vmatpush.msra.mxu0 0.0
    %84 = vmatpush.msra.mxu0 0.0
    %85 = vmatpush.msra.mxu0 0.0
    %86 = vmatpush.msra.mxu0 0.0
    %87 = vmatpush.msra.mxu0 0.0
    %88 = vmatpush.msra.mxu0 0.0
    %89 = vmatpush.msra.mxu0 0.0
    %90 = vmatpush.msra.mxu0 %v70
    %91 = vmatpush.msra.mxu0 %v69
    %92 = vmatpush.msra.mxu0 %v68
    %93 = vmatpush.msra.mxu0 %v67
    %94 = vmatpush.msra.mxu0 %v66
    %95 = vmatpush.msra.mxu0 %v65
    %96 = vmatpush.msra.mxu0 %v64
    %97 = vmatpush.msra.mxu0 %v63
    %98 = vmatmul.f32.gmra.mxu0 %v77
    %v99 = vpop.f32.mrf.mxu0
    %v100 = vadd.f32 %v73, %v99
    %101 = vmatmul.f32.gmra.mxu0 %v80
    %v102 = vpop.f32.mrf.mxu0
    %v103 = vadd.f32 %v73, %v102
    %104 = vdwg.mxu0
    %105 = vst.msk [vmem:[#allocation2] sm:$0xff] %vm31, %v100
    %106 = vst.msk [vmem:[#allocation2 + $0x8] sm:$0xff] %vm31, %v103
    // Predicated region
    $region22: #{tpu_custom_call.1} parent=1 // pred_check
      _
    $region23: #{tpu_custom_call.1} parent=1 // pred_check_branch
      %108 = sbr.rel (0) target = $region25
    $region24: #{tpu_custom_call.1} parent=1 // pred_region
      %110 = vsyncadd [#allocation3], 0
      %s111 = sshll.u32 [#allocation2], 4
      %s112 = int_to_ptr.vmem [resolvable:$true] %s111
      %s113 = sshll.u32 %s5, 4
      %s114 = int_to_ptr.hbm [resolvable:$true] %s113
      %119 = dma.vmem_to_hbm [thread:$0]  %s112, 256, %s114, [#allocation3], 128, 128, 8
    $region25: #{tpu_custom_call.1} parent=1 // pred_fallthru
      _
    // Predicated region
    $region26: #{tpu_custom_call.1} parent=1 // pred_check
      _
    $region27: #{tpu_custom_call.1} parent=1 // pred_check_branch
      %121 = sbr.rel (0) target = $region29
    $region28: #{tpu_custom_call.1} parent=1 // pred_region
      %123 = dma.done [#allocation3], 256
    $region29: #{tpu_custom_call.1} parent=1 // pred_fallthru
      _
    %124 = vsyncpa [#allocation3], 1

</llo_original>
